<compile_context>
chip_gen: v7x
topology: tpu7x:2x2x1
jax: 0.10.0
libtpu: 0.0.40
codegen_flags: <defaults>
</compile_context>

<pallas_src>
import functools

import jax
import jax.numpy as jnp
from jax.experimental import pallas as pl
from jax.experimental.pallas import tpu as pltpu

_MIB = 1024 * 1024


def _round_up(v, m):
    return (v + m - 1) // m * m


def _cdiv(a, b):
    return (a + b - 1) // b


# ---------------------------------------------------------------------------
# Kernels
# ---------------------------------------------------------------------------
def _fused_kernel(x_ref, w_ref, b_ref, o_ref):
    """Single pass: per-batch set max + centered Linear, whole set per block."""
    tb, n, d_in = x_ref.shape
    d_out = o_ref.shape[-1]
    x = x_ref[...].astype(jnp.float32)                    # (tb, N, D_in)
    xm = jnp.max(x, axis=1, keepdims=True)                # XLU sublane reduce
    xc = x - xm                                           # f32 subtract
    lhs = xc.reshape(tb * n, d_in).astype(w_ref.dtype)    # free: n % 8 == 0
    y = jnp.dot(lhs, w_ref[...], preferred_element_type=jnp.float32)
    y = y + b_ref[...].astype(jnp.float32)                # (1, D_out) broadcast
    o_ref[...] = y.reshape(tb, n, d_out).astype(o_ref.dtype)


def _set_max_kernel(x_ref, xm_ref, *, n_valid):
    """Two-phase path, phase A: running per-batch max over 8-aligned N tiles."""
    ni = pl.program_id(1)
    tb, tn, d_in = x_ref.shape
    x = x_ref[...].astype(jnp.float32)
    # Mask rows past the true set length (ragged trailing N tile reads garbage).
    row = jax.lax.broadcasted_iota(jnp.int32, (tn, d_in), 0) + ni * tn
    x = jnp.where((row < n_valid)[None, :, :], x, -jnp.inf)
    m = jnp.max(x, axis=1, keepdims=True)                 # (tb, 1, D_in)

    @pl.when(ni == 0)
    def _():
        xm_ref[...] = m

    @pl.when(ni != 0)
    def _():
        xm_ref[...] = jnp.maximum(xm_ref[...], m)


def _centered_linear_kernel(x_ref, xm_ref, w_ref, b_ref, o_ref):
    """Two-phase path, phase B: Gamma(x - xm) on one (tb, tn) tile."""
    tb, tn, d_in = x_ref.shape
    d_out = o_ref.shape[-1]
    xc = x_ref[...].astype(jnp.float32) - xm_ref[...]     # (tb, tn, D_in)
    lhs = xc.reshape(tb * tn, d_in).astype(w_ref.dtype)   # free: tn % 8 == 0
    y = jnp.dot(lhs, w_ref[...], preferred_element_type=jnp.float32)
    y = y + b_ref[...].astype(jnp.float32)
    o_ref[...] = y.reshape(tb, tn, d_out).astype(o_ref.dtype)


# ---------------------------------------------------------------------------
# Wrapper
# ---------------------------------------------------------------------------
def _weight_spec(shape, index_map, nbytes):
    # Grid-invariant weight: with a constant index_map a second pipeline buffer
    # is pure VMEM waste; drop to a single buffer once the weight is big enough
    # to matter (large-D models, relevant for v7x's 64 MiB VMEM).
    if nbytes > 512 * 1024:
        return pl.BlockSpec(shape, index_map, pipeline_mode=pl.Buffered(1))
    return pl.BlockSpec(shape, index_map)


def perm_equi1_max(x, w_gamma, b_gamma, *,
                   target_rows=2048,
                   vmem_budget_bytes=24 * _MIB,
                   min_grid_steps=2,
                   max_set_rows_per_block=None,
                   mxu_dtype=None):
    """PermEqui1_max forward: Gamma(x - max over the set dim).

    x:        (B, N, D_in) set batch.
    w_gamma:  (D_out, D_in) torch nn.Linear weight layout.
    b_gamma:  (D_out,) bias.
    """
    B, N, D_in = x.shape
    D_out = w_gamma.shape[0]

    # MXU operand dtype: bf16 when the activations are already bf16 (halves HBM
    # bytes, full MXU rate); otherwise keep the input precision.
    if mxu_dtype is None:
        mxu_dtype = jnp.bfloat16 if x.dtype == jnp.bfloat16 else x.dtype
    w_t = w_gamma.T.astype(mxu_dtype)                     # (D_in, D_out), tiny
    b_2d = b_gamma.astype(jnp.float32).reshape(1, D_out)

    x_bytes = x.dtype.itemsize
    w_bytes = D_in * D_out * jnp.dtype(mxu_dtype).itemsize
    # TODO(synk): tile D_out for very large Gamma weights (> ~16 MiB) instead of
    # keeping the whole weight resident in VMEM.
    fixed_bytes = 2 * w_bytes + 2 * D_out * 4
    vmem_limit = int(min(max(2 * vmem_budget_bytes, 32 * _MIB), 56 * _MIB))

    n_work = _round_up(N, 8)                              # sublane-aligned set length
    per_batch_fused = 2 * n_work * (D_in + D_out) * x_bytes   # dbl-buffered x + out
    forced_tiling = (max_set_rows_per_block is not None
                     and max_set_rows_per_block < N)
    fused_fits = per_batch_fused + fixed_bytes <= vmem_budget_bytes
    use_fused = (N < 8) or (N % 8 == 0 and fused_fits and not forced_tiling)

    if use_fused:
        x_in = x
        if N % 8 != 0:
            # Tiny unaligned set (< 8 elements): replicate the last element up
            # to a multiple of 8 once (cannot change the per-batch max) so the
            # in-kernel flatten stays relayout-free; duplicate rows are sliced.
            x_in = jnp.pad(x, ((0, 0), (0, n_work - N), (0, 0)), mode="edge")

        # Batch elements per grid step: ~target_rows MXU rows per step to
        # amortize the ~0.35us per-step cost and run near the HBM roofline,
        # capped by the VMEM budget, with >= min_grid_steps steps for v7x's
        # two TensorCores.  No batch padding: ragged trailing block is masked.
        steps = min(B, max(min_grid_steps, _cdiv(B * n_work, target_rows)))
        tb = _cdiv(B, steps)
        tb = max(1, min(tb, max(1, (vmem_budget_bytes - fixed_bytes)
                                // max(per_batch_fused, 1))))
        steps = _cdiv(B, tb)
        tb = _cdiv(B, steps)          # rebalance so the ragged tail stays small

        out = pl.pallas_call(
            _fused_kernel,
            out_shape=jax.ShapeDtypeStruct((B, n_work, D_out), x.dtype),
            grid_spec=pltpu.PrefetchScalarGridSpec(
                num_scalar_prefetch=0,
                grid=(steps,),
                in_specs=[
                    pl.BlockSpec((tb, n_work, D_in), lambda b: (b, 0, 0)),
                    _weight_spec((D_in, D_out), lambda b: (0, 0), w_bytes),
                    pl.BlockSpec((1, D_out), lambda b: (0, 0)),
                ],
                out_specs=pl.BlockSpec((tb, n_work, D_out), lambda b: (b, 0, 0)),
            ),
            compiler_params=pltpu.CompilerParams(
                dimension_semantics=("parallel",),
                vmem_limit_bytes=vmem_limit),
        )(x_in, w_t, b_2d)
        return out if n_work == N else out[:, :N, :]

    # ----------------------------------------------------------------------
    # Two-phase path: (A) running per-batch set max over 8-aligned N tiles,
    # (B) tiled centered matmul.  Used for long sets that do not fit the VMEM
    # budget (v7x fit cliff) and for sublane-unaligned N >= 8.
    # ----------------------------------------------------------------------
    row_bytes = 2 * (D_in + D_out) * x_bytes              # dbl-buffered x + out rows
    xm_batch_bytes = 2 * D_in * 4                         # dbl-buffered per-batch max

    tn_budget = (vmem_budget_bytes - fixed_bytes - xm_batch_bytes) // max(row_bytes, 1)
    tn = max(8, min(_round_up(target_rows, 8), (tn_budget // 8) * 8))
    if max_set_rows_per_block is not None:
        tn = min(tn, max(8, _round_up(max_set_rows_per_block, 8)))
    tn = min(tn, max(8, (N // 8) * 8))                    # keep tn <= N (N >= 8 here)
    n_steps = _cdiv(N, tn)

    tb = max(1, min(max(1, target_rows // tn),
                    max(1, (vmem_budget_bytes - fixed_bytes)
                        // max(tn * row_bytes + xm_batch_bytes, 1))))
    tb = min(tb, max(1, _cdiv(B, min_grid_steps)))
    b_steps = _cdiv(B, tb)
    tb = _cdiv(B, b_steps)

    xm = pl.pallas_call(
        functools.partial(_set_max_kernel, n_valid=N),
        out_shape=jax.ShapeDtypeStruct((B, 1, D_in), jnp.float32),
        grid_spec=pltpu.PrefetchScalarGridSpec(
            num_scalar_prefetch=0,
            grid=(b_steps, n_steps),
            in_specs=[pl.BlockSpec((tb, tn, D_in), lambda b, n: (b, n, 0))],
            out_specs=pl.BlockSpec((tb, 1, D_in), lambda b, n: (b, 0, 0)),
        ),
        compiler_params=pltpu.CompilerParams(
            dimension_semantics=("parallel", "arbitrary"),
            vmem_limit_bytes=vmem_limit),
    )(x)

    out = pl.pallas_call(
        _centered_linear_kernel,
        out_shape=jax.ShapeDtypeStruct((B, N, D_out), x.dtype),
        grid_spec=pltpu.PrefetchScalarGridSpec(
            num_scalar_prefetch=0,
            grid=(b_steps, n_steps),
            in_specs=[
                pl.BlockSpec((tb, tn, D_in), lambda b, n: (b, n, 0)),
                pl.BlockSpec((tb, 1, D_in), lambda b, n: (b, 0, 0)),
                _weight_spec((D_in, D_out), lambda b, n: (0, 0), w_bytes),
                pl.BlockSpec((1, D_out), lambda b, n: (0, 0)),
            ],
            out_specs=pl.BlockSpec((tb, tn, D_out), lambda b, n: (b, n, 0)),
        ),
        compiler_params=pltpu.CompilerParams(
            dimension_semantics=("parallel", "parallel"),
            vmem_limit_bytes=vmem_limit),
    )(x, xm, w_t, b_2d)
    return out


def perm_equi1_max_ref(x, w_gamma, b_gamma):
    xf = x.astype(jnp.float32)
    xm = jnp.max(xf, axis=1, keepdims=True)
    return (jnp.einsum("bnd,od->bno", xf - xm, w_gamma.astype(jnp.float32))
            + b_gamma.astype(jnp.float32))


if __name__ == "__main__":
    # 1) Baseline shapes (fused path, f32, N multiple of 8).
    B, N, D_in, D_out = 2, 8, 32, 32
    kx, kw, kb = jax.random.split(jax.random.PRNGKey(0), 3)
    x = jax.random.normal(kx, (B, N, D_in), dtype=jnp.float32)
    w = jax.random.normal(kw, (D_out, D_in), dtype=jnp.float32) * 0.1
    b = jax.random.normal(kb, (D_out,), dtype=jnp.float32) * 0.1
    out = jax.block_until_ready(perm_equi1_max(x, w, b))
    assert out.shape == (B, N, D_out)
    assert jnp.allclose(out, perm_equi1_max_ref(x, w, b), atol=1e-5, rtol=1e-5)

    # 2) Ragged batch tiling (B not divisible by the batch tile).
    k1, k2, k3 = jax.random.split(jax.random.PRNGKey(1), 3)
    x2 = jax.random.normal(k1, (5, 16, 24), dtype=jnp.float32)
    w2 = jax.random.normal(k2, (40, 24), dtype=jnp.float32) * 0.1
    b2 = jax.random.normal(k3, (40,), dtype=jnp.float32) * 0.1
    out2 = jax.block_until_ready(perm_equi1_max(x2, w2, b2))
    assert jnp.allclose(out2, perm_equi1_max_ref(x2, w2, b2), atol=1e-5, rtol=1e-5)

    # 3) Two-phase long-set path (forced N tiling, ragged trailing set tile).
    x3 = jax.random.normal(jax.random.PRNGKey(2), (3, 50, 24), dtype=jnp.float32)
    out3 = jax.block_until_ready(
        perm_equi1_max(x3, w2, b2, max_set_rows_per_block=16))
    assert jnp.allclose(out3, perm_equi1_max_ref(x3, w2, b2), atol=1e-5, rtol=1e-5)

    # 4) Tiny sublane-unaligned set (N=5 -> one-time edge pad, fused path).
    x4 = jax.random.normal(jax.random.PRNGKey(3), (2, 5, 24), dtype=jnp.float32)
    out4 = jax.block_until_ready(perm_equi1_max(x4, w2, b2))
    assert out4.shape == (2, 5, 40)
    assert jnp.allclose(out4, perm_equi1_max_ref(x4, w2, b2), atol=1e-5, rtol=1e-5)

    # 5) bf16 activations: bf16 MXU operands, f32 max/subtract/accumulate.
    xb, wb = x.astype(jnp.bfloat16), w.astype(jnp.bfloat16)
    outb = jax.block_until_ready(perm_equi1_max(xb, wb, b))
    assert outb.dtype == jnp.bfloat16
    assert jnp.allclose(outb.astype(jnp.float32), perm_equi1_max_ref(xb, wb, b),
                        atol=1e-1, rtol=5e-2)

    print("KERNEL_OK")
</pallas_src>

<mosaic_0001>
module attributes {stable_mosaic.version = 11 : i64} {
  func.func @_fused_kernel(%arg0: i32, %arg1: memref<1x8x32xf32, #tpu.memory_space<vmem>>, %arg2: memref<32x32xf32, #tpu.memory_space<vmem>>, %arg3: memref<1x32xf32, #tpu.memory_space<vmem>>, %arg4: memref<1x8x32xf32, #tpu.memory_space<vmem>>) attributes {dimension_semantics = [#tpu.dimension_semantics<parallel>], iteration_bounds = array<i64: 2>, scalar_prefetch = 0 : i64, scratch_operands = 0 : i64, tpu.core_type = #tpu.core_type<tc>, window_params = [{transform_indices = @transform_0, window_bounds = array<i64: 1, 8, 32>}, {pipeline_mode = #tpu.pipeline_mode<synchronous>, transform_indices = @transform_1, window_bounds = array<i64: 32, 32>}, {pipeline_mode = #tpu.pipeline_mode<synchronous>, transform_indices = @transform_2, window_bounds = array<i64: 1, 32>}, {transform_indices = @transform_3, window_bounds = array<i64: 1, 8, 32>}]} {
    %c0 = arith.constant 0 : index
    %c0_0 = arith.constant 0 : index
    %c0_1 = arith.constant 0 : index
    %0 = vector.load %arg1[%c0, %c0_0, %c0_1] : memref<1x8x32xf32, #tpu.memory_space<vmem>>, vector<1x8x32xf32>
    %cst = arith.constant dense<0xFF800000> : vector<1x32xf32>
    %1 = vector.multi_reduction <maximumf>, %0, %cst [1] : vector<1x8x32xf32> to vector<1x32xf32>
    %2 = vector.shape_cast %1 : vector<1x32xf32> to vector<1x1x32xf32>
    %3 = vector.broadcast %2 : vector<1x1x32xf32> to vector<1x8x32xf32>
    %4 = arith.subf %0, %3 : vector<1x8x32xf32>
    %5 = vector.shape_cast %4 : vector<1x8x32xf32> to vector<8x32xf32>
    %c0_2 = arith.constant 0 : index
    %c0_3 = arith.constant 0 : index
    %6 = vector.load %arg2[%c0_2, %c0_3] : memref<32x32xf32, #tpu.memory_space<vmem>>, vector<32x32xf32>
    %cst_4 = arith.constant dense<0.000000e+00> : vector<8x32xf32>
    %7 = tpu.matmul %5, %6, %cst_4 {dimension_numbers = #tpu.dot_dimension_numbers<[1], [0], [0], [1], [0, 0, 1, 1], [], []>} : vector<8x32xf32>, vector<32x32xf32>, vector<8x32xf32> -> vector<8x32xf32>
    %c0_5 = arith.constant 0 : index
    %c0_6 = arith.constant 0 : index
    %8 = vector.load %arg3[%c0_5, %c0_6] : memref<1x32xf32, #tpu.memory_space<vmem>>, vector<1x32xf32>
    %9 = vector.broadcast %8 : vector<1x32xf32> to vector<8x32xf32>
    %10 = arith.addf %7, %9 : vector<8x32xf32>
    %11 = vector.shape_cast %10 : vector<8x32xf32> to vector<1x8x32xf32>
    %c0_7 = arith.constant 0 : index
    %c0_8 = arith.constant 0 : index
    %c0_9 = arith.constant 0 : index
    %12 = vector.load %arg4[%c0_7, %c0_8, %c0_9] : memref<1x8x32xf32, #tpu.memory_space<vmem>>, vector<1x8x32xf32>
    tpu.vector_store %arg4[%c0_7, %c0_8, %c0_9], %11 {strides = array<i32>} : memref<1x8x32xf32, #tpu.memory_space<vmem>>, vector<1x8x32xf32>,
    return
  }
  func.func @transform_0(%arg0: i32) -> (i32, i32, i32) {
    %c0_i32 = arith.constant 0 : i32
    %c0_i32_0 = arith.constant 0 : i32
    %c0_i32_1 = arith.constant 0 : i32
    return %arg0, %c0_i32, %c0_i32_0 : i32, i32, i32
  }
  func.func @transform_1(%arg0: i32) -> (i32, i32) {
    %c0_i32 = arith.constant 0 : i32
    %c0_i32_0 = arith.constant 0 : i32
    %c0_i32_1 = arith.constant 0 : i32
    return %c0_i32, %c0_i32_0 : i32, i32
  }
  func.func @transform_2(%arg0: i32) -> (i32, i32) {
    %c0_i32 = arith.constant 0 : i32
    %c0_i32_0 = arith.constant 0 : i32
    %c0_i32_1 = arith.constant 0 : i32
    return %c0_i32, %c0_i32_0 : i32, i32
  }
  func.func @transform_3(%arg0: i32) -> (i32, i32, i32) {
    %c0_i32 = arith.constant 0 : i32
    %c0_i32_0 = arith.constant 0 : i32
    %c0_i32_1 = arith.constant 0 : i32
    return %arg0, %c0_i32, %c0_i32_0 : i32, i32, i32
  }
}

</mosaic_0001>

<llo_original>
// kernel: tpu_custom_call.1
$region0: #{tpu_custom_call.1}
  #allocation0 [shape = 'u32[]', space=smem, size = 0x4, offset = 0x4, fixed_abs, tag = 'smem constant byte address 0x4 - core index']
  #allocation1 [shape = 'u32[144,128]{1,0:T(1,128)}', space=vmem, size = 0x12000, scoped, tag = 'internal scratch']
  %s0 = inlined_call_operand.hbm [shape: f32[2,8,32], index: 0, kind: input, shape index: {}]
  %s1 = inlined_call_operand.hbm [shape: f32[32,32], index: 1, kind: input, shape index: {}]
  %s2 = inlined_call_operand.vmem [shape: f32[1,32], index: 2, kind: input, shape index: {}]
  %s3 = inlined_call_operand.hbm [shape: f32[2,8,32], index: 3, kind: output, shape index: {}]
  %s4 = sld [smem:[#allocation0]]
  $region53: #{tpu_custom_call.1} parent=0
    _
  %s6 = ssub.s32 1, %s4
  %s7 = scalar_select 0, %s6, %s4
  $region1: #{tpu_custom_call.1} parent=0
    #allocation2 [shape = 'u8[8192]{0}', space=vmem, size = 0x2000, scoped, tag = 'input window, operand 0']
    #allocation3 [shape = 's32[2]{0}', space=sflag, size = 0x8, scoped, tag = 'scoped memory for tpu_custom_call.1']
    #allocation4 [shape = 's32[2]{0}', space=sflag, size = 0x8, scoped, tag = 'scoped memory for tpu_custom_call.1']
    #allocation5 [shape = 'u8[16384]{0}', space=vmem, size = 0x4000, scoped, tag = 'input window, operand 1, single buffered']
    #allocation6 [shape = 's32[1]{0}', space=sflag, size = 0x4, scoped, tag = 'scoped memory for tpu_custom_call.1']
    #allocation7 [shape = 'u8[8192]{0}', space=vmem, size = 0x2000, scoped, tag = 'output window, operand 0']
    %8 = vsyncpa [#allocation3], 0
    %s9 = scalar_lea.sflag [#allocation3], 1
    %10 = vsyncpa %s9, 0
    %11 = vsyncpa [#allocation6], 0
    %12 = vsyncpa [#allocation4], 0
    %s13 = scalar_lea.sflag [#allocation4], 1
    %14 = vsyncpa %s13, 0
    loop: start=0, step=1, limit=4
    $region2: #{tpu_custom_call.1} parent=1 // loop_pre_header
      _
    $region3: #{tpu_custom_call.1} parent=1 // loop_header
      %s16 = sphi 0, %s20
      %p17 = scmp.ge.s32.totalorder %s16, 4
      %s26 = sphi 0, %s28
      %s29 = sphi 0, %s26
      %s30 = sphi 0, %s29
      %s46 = sphi 0, %s30
      %s50 = sphi 0, %s50
      %s52 = sphi 0, %s50
      %s53 = sphi 0, %s52
      %s67 = sphi 0, %s53
      %s71 = sphi 0, %s71
      %s73 = sphi 0, %s71
      %s74 = sphi 0, %s73
      %s88 = sphi 0, %s74
      %s94 = sphi 0, %s96
      %s97 = sphi 0, %s94
      %s98 = sphi 0, %s97
      %s114 = sphi 0, %s98
    $region4: #{tpu_custom_call.1} parent=1 // loop_header_branch
      %19 = sbr.rel (%p17) target = $region8
    $region5: #{tpu_custom_call.1} parent=1 // loop_body
      %s21 = ssub.s32 %s16, 1
      %s22 = ssub.s32 %s16, 2
      %s23 = sadd.s32 %s16, 1
      %s24 = ssub.s32 %s16, %s23
      %p25 = scmp.eq.s32.totalorder %s24, 0
      %s27 = sadd.s32 %s26, 1
      %s28 = scalar_select %p25, %s26, %s27
      %p31 = pneg %p25
      %p32 = scmp.eq.s32.totalorder %s16, 1
      %p33 = por %p31, %p32
      %p34 = scmp.ne.s32.totalorder %s26, %s29
      %p35 = scmp.eq.s32.totalorder %s16, 0
      %p36 = por %p34, %p35
      %p37 = scmp.ne.s32.totalorder %s26, %s29
      %p38 = scmp.eq.s32.totalorder %s21, 1
      %p39 = por %p37, %p38
      %p40 = scmp.ne.s32.totalorder %s29, %s30
      %p41 = scmp.eq.s32.totalorder %s21, 0
      %p42 = por %p40, %p41
      %p43 = scmp.ne.s32.totalorder %s29, %s30
      %p44 = scmp.eq.s32.totalorder %s22, 1
      %p45 = por %p43, %p44
      %p47 = scmp.ne.s32.totalorder %s30, %s46
      %p48 = scmp.eq.s32.totalorder %s22, 0
      %p49 = por %p47, %p48
      %s51 = sadd.s32 %s50, 1
      %p54 = scmp.eq.s32.totalorder %s16, 1
      %p55 = scmp.ne.s32.totalorder %s50, %s52
      %p56 = scmp.eq.s32.totalorder %s16, 0
      %p57 = por %p55, %p56
      %p58 = scmp.ne.s32.totalorder %s50, %s52
      %p59 = scmp.eq.s32.totalorder %s21, 1
      %p60 = por %p58, %p59
      %p61 = scmp.ne.s32.totalorder %s52, %s53
      %p62 = scmp.eq.s32.totalorder %s21, 0
      %p63 = por %p61, %p62
      %p64 = scmp.ne.s32.totalorder %s52, %s53
      %p65 = scmp.eq.s32.totalorder %s22, 1
      %p66 = por %p64, %p65
      %p68 = scmp.ne.s32.totalorder %s53, %s67
      %p69 = scmp.eq.s32.totalorder %s22, 0
      %p70 = por %p68, %p69
      %s72 = sadd.s32 %s71, 1
      %p75 = scmp.eq.s32.totalorder %s16, 1
      %p76 = scmp.ne.s32.totalorder %s71, %s73
      %p77 = scmp.eq.s32.totalorder %s16, 0
      %p78 = por %p76, %p77
      %p79 = scmp.ne.s32.totalorder %s71, %s73
      %p80 = scmp.eq.s32.totalorder %s21, 1
      %p81 = por %p79, %p80
      %p82 = scmp.ne.s32.totalorder %s73, %s74
      %p83 = scmp.eq.s32.totalorder %s21, 0
      %p84 = por %p82, %p83
      %p85 = scmp.ne.s32.totalorder %s73, %s74
      %p86 = scmp.eq.s32.totalorder %s22, 1
      %p87 = por %p85, %p86
      %p89 = scmp.ne.s32.totalorder %s74, %s88
      %p90 = scmp.eq.s32.totalorder %s22, 0
      %p91 = por %p89, %p90
      %s92 = ssub.s32 %s16, %s23
      %p93 = scmp.eq.s32.totalorder %s92, 0
      %s95 = sadd.s32 %s94, 1
      %s96 = scalar_select %p93, %s94, %s95
      %p99 = pneg %p93
      %p100 = scmp.eq.s32.totalorder %s16, 1
      %p101 = por %p99, %p100
      %p102 = scmp.ne.s32.totalorder %s94, %s97
      %p103 = scmp.eq.s32.totalorder %s16, 0
      %p104 = por %p102, %p103
      %p105 = scmp.ne.s32.totalorder %s94, %s97
      %p106 = scmp.eq.s32.totalorder %s21, 1
      %p107 = por %p105, %p106
      %p108 = scmp.ne.s32.totalorder %s97, %s98
      %p109 = scmp.eq.s32.totalorder %s21, 0
      %p110 = por %p108, %p109
      %p111 = scmp.ne.s32.totalorder %s97, %s98
      %p112 = scmp.eq.s32.totalorder %s22, 1
      %p113 = por %p111, %p112
      %p115 = scmp.ne.s32.totalorder %s98, %s114
      %p116 = scmp.eq.s32.totalorder %s22, 0
      %p117 = por %p115, %p116
      %p118 = scmp.le.s32.totalorder 1, %s16
      %p119 = scmp.lt.s32.totalorder %s16, 3
      %p120 = pnand %p118, %p119
      %p121 = pneg %p120
      // Predicated region
      $region9: #{tpu_custom_call.1} parent=5 // pred_check
        _
      $region10: #{tpu_custom_call.1} parent=5 // pred_check_branch
        %123 = sbr.rel (%p120) target = $region12
      $region11: #{tpu_custom_call.1} parent=5 // pred_region
        %s124 = ssub.s32 %s16, 1
        // Predicated region
        $region13: #{tpu_custom_call.1} parent=11 // pred_check
          %p125 = pneg %p63
        $region14: #{tpu_custom_call.1} parent=11 // pred_check_branch
          %127 = sbr.rel (%p125) target = $region16
        $region15: #{tpu_custom_call.1} parent=11 // pred_region
          %s129 = ssub.s32 512, 512
          %130 = vsyncadd [#allocation6], %s129
          %s131 = sshll.u32 [#allocation5], 4
          %s132 = int_to_ptr.vmem [resolvable:$true] %s131
          %137 = dma.hbm_to_vmem [thread:$0]  %s1, 512, %s132, [#allocation6], 128, 128, 8
        $region16: #{tpu_custom_call.1} parent=11 // pred_fallthru
          _
        // Predicated region
        $region17: #{tpu_custom_call.1} parent=11 // pred_check
          %p138 = pneg %p84
        $region18: #{tpu_custom_call.1} parent=11 // pred_check_branch
          %140 = sbr.rel (%p138) target = $region20
        $region19: #{tpu_custom_call.1} parent=11 // pred_region
          _
        $region20: #{tpu_custom_call.1} parent=11 // pred_fallthru
          _
      $region12: #{tpu_custom_call.1} parent=5 // pred_fallthru
        _
      %p141 = scmp.lt.s32.totalorder %s16, 2
      // Predicated region
      $region21: #{tpu_custom_call.1} parent=5 // pred_check
        %p142 = pneg %p141
      $region22: #{tpu_custom_call.1} parent=5 // pred_check_branch
        %144 = sbr.rel (%p142) target = $region24
      $region23: #{tpu_custom_call.1} parent=5 // pred_region
        // Predicated region
        $region25: #{tpu_custom_call.1} parent=23 // pred_check
          %p145 = pneg %p36
        $region26: #{tpu_custom_call.1} parent=23 // pred_check_branch
          %147 = sbr.rel (%p145) target = $region28
        $region27: #{tpu_custom_call.1} parent=23 // pred_region
          %s148 = sand.u32 %s26, 1
          %s149 = scalar_lea.sflag [#allocation3], %s148
          %s150 = sand.u32 %s26, 1
          %s151 = smul.addr %s150, 8
          %s152 = scalar_lea.vmem [#allocation2], %s151
          %s154 = ssub.s32 128, 128
          %155 = vsyncadd %s149, %s154
          %s156 = smul.addr %s16, 128
          %s157 = scalar_lea.hbm %s0, %s156
          %s159 = sshll.u32 %s152, 4
          %s160 = int_to_ptr.vmem [resolvable:$true] %s159
          %162 = dma.hbm_to_vmem [thread:$0]  %s157, 128, %s160, %s149
        $region28: #{tpu_custom_call.1} parent=23 // pred_fallthru
          _
      $region24: #{tpu_custom_call.1} parent=5 // pred_fallthru
        _
      %p163 = scmp.le.s32.totalorder 1, %s16
      %p164 = scmp.lt.s32.totalorder %s16, 3
      %p165 = pnand %p163, %p164
      %p166 = pneg %p165
      // Predicated region
      $region29: #{tpu_custom_call.1} parent=5 // pred_check
        _
      $region30: #{tpu_custom_call.1} parent=5 // pred_check_branch
        %168 = sbr.rel (%p165) target = $region32
      $region31: #{tpu_custom_call.1} parent=5 // pred_region
        %s169 = ssub.s32 %s16, 1
        %s170 = sand.u32 %s29, 1
        %s171 = scalar_lea.sflag [#allocation3], %s170
        %s172 = sand.u32 %s29, 1
        %s173 = smul.addr %s172, 8
        %s174 = scalar_lea.vmem [#allocation2], %s173
        // Predicated region
        $region33: #{tpu_custom_call.1} parent=31 // pred_check
          %p175 = pneg %p42
        $region34: #{tpu_custom_call.1} parent=31 // pred_check_branch
          %177 = sbr.rel (%p175) target = $region36
        $region35: #{tpu_custom_call.1} parent=31 // pred_region
          %178 = dma.done %s171, 128
        $region36: #{tpu_custom_call.1} parent=31 // pred_fallthru
          _
        // Predicated region
        $region37: #{tpu_custom_call.1} parent=31 // pred_check
          %p179 = pneg %p63
        $region38: #{tpu_custom_call.1} parent=31 // pred_check_branch
          %181 = sbr.rel (%p179) target = $region40
        $region39: #{tpu_custom_call.1} parent=31 // pred_region
          %182 = dma.done [#allocation6], 512
        $region40: #{tpu_custom_call.1} parent=31 // pred_fallthru
          _
        %s183 = sand.u32 %s29, 1
        %s184 = scalar_lea.sflag [#allocation3], %s183
        %s185 = sand.u32 %s29, 1
        %s186 = smul.addr %s185, 8
        %s187 = scalar_lea.vmem [#allocation2], %s186
        %p188 = pneg %p42
        %p189 = pneg %p39
        %p190 = pneg %p63
        %p191 = pneg %p60
        %p192 = pneg %p84
        %p193 = pneg %p81
        %p194 = pneg %p110
        %p195 = pneg %p107
        %s196 = sand.u32 %s97, 1
        %s197 = scalar_lea.sflag [#allocation4], %s196
        %s198 = sand.u32 %s97, 1
        %s199 = smul.addr %s198, 8
        %s200 = scalar_lea.vmem [#allocation7], %s199
        %v201 = vld [vmem:[%s174] sm:$0xff]
        %vm202 = vcmask 261120
        %v203 = vsel %vm202, %v201, -inf
        %v204 = vrot.slane %v203, 4
        %v205 = vmax.f32 %v203, %v204
        %v206 = vrot.slane %v205, 2
        %v207 = vmax.f32 %v205, %v206
        %v208 = vrot.slane %v207, 1
        %v209 = vmax.f32 %v207, %v208
        %v210 = vsub.f32 %v201, %v209
        %v211 = vld [vmem:[#allocation5] sm:$0xff]
        %v212 = vld [vmem:[#allocation5 + $0x8] sm:$0xff]
        %v213 = vld [vmem:[#allocation5 + $0x10] sm:$0xff]
        %v214 = vld [vmem:[#allocation5 + $0x18] sm:$0xff]
        %v215 = vld [vmem:[%s2] sm:$0x1]
        %v217 = vlaneseq
        %v218 = vshrl.u32 %v217, 7
        %v219 = vsub.s32 0, %v218
        %v220 = vrot.slane %v215, %v219
        %v223 = vsel %vm202, %v210, 0
        %225 = vmatprep.subr.mxu0 0.0
        %226 = vmatpush1.msra.mxu0 %v211
        %227 = vmatprep.subr.mxu0 0.0
        %228 = vmatpush1.msra.mxu0 %v212
        %229 = vmatprep.subr.mxu0 0.0
        %230 = vmatpush1.msra.mxu0 %v213
        %231 = vmatprep.subr.mxu0 0.0
        %232 = vmatpush1.msra.mxu0 %v214
        %233 = vmatprep.subr.mxu0 0.0
        %234 = vmatpush1.msra.mxu0 0.0
        %235 = vmatprep.subr.mxu0 0.0
        %236 = vmatpush1.msra.mxu0 0.0
        %237 = vmatprep.subr.mxu0 0.0
        %238 = vmatpush1.msra.mxu0 0.0
        %239 = vmatprep.subr.mxu0 0.0
        %240 = vmatpush1.msra.mxu0 0.0
        %241 = vmatprep.subr.mxu0 0.0
        %242 = vmatpush1.msra.mxu0 0.0
        %243 = vmatprep.subr.mxu0 0.0
        %244 = vmatpush1.msra.mxu0 0.0
        %245 = vmatprep.subr.mxu0 0.0
        %246 = vmatpush1.msra.mxu0 0.0
        %247 = vmatprep.subr.mxu0 0.0
        %248 = vmatpush1.msra.mxu0 0.0
        %249 = vmatprep.subr.mxu0 0.0
        %250 = vmatpush1.msra.mxu0 0.0
        %251 = vmatprep.subr.mxu0 0.0
        %252 = vmatpush1.msra.mxu0 0.0
        %253 = vmatprep.subr.mxu0 0.0
        %254 = vmatpush1.msra.mxu0 0.0
        %255 = vmatprep.subr.mxu0 0.0
        %256 = vmatpush1.msra.mxu0 0.0
        %257 = vmatprep.subr.mxu0 0.0
        %258 = vmatpush1.msra.mxu0 0.0
        %259 = vmatprep.subr.mxu0 0.0
        %260 = vmatpush1.msra.mxu0 0.0
        %261 = vmatprep.subr.mxu0 0.0
        %262 = vmatpush1.msra.mxu0 0.0
        %263 = vmatprep.subr.mxu0 0.0
        %264 = vmatpush1.msra.mxu0 0.0
        %265 = vmatprep.subr.mxu0 0.0
        %266 = vmatpush1.msra.mxu0 0.0
        %267 = vmatprep.subr.mxu0 0.0
        %268 = vmatpush1.msra.mxu0 0.0
        %269 = vmatprep.subr.mxu0 0.0
        %270 = vmatpush1.msra.mxu0 0.0
        %271 = vmatprep.subr.mxu0 0.0
        %272 = vmatpush1.msra.mxu0 0.0
        %273 = vmatprep.subr.mxu0 0.0
        %274 = vmatpush1.msra.mxu0 0.0
        %275 = vmatprep.subr.mxu0 0.0
        %276 = vmatpush1.msra.mxu0 0.0
        %277 = vmatprep.subr.mxu0 0.0
        %278 = vmatpush1.msra.mxu0 0.0
        %279 = vmatprep.subr.mxu0 0.0
        %280 = vmatpush1.msra.mxu0 0.0
        %281 = vmatprep.subr.mxu0 0.0
        %282 = vmatpush1.msra.mxu0 0.0
        %283 = vmatprep.subr.mxu0 0.0
        %284 = vmatpush1.msra.mxu0 0.0
        %285 = vmatprep.subr.mxu0 0.0
        %286 = vmatpush1.msra.mxu0 0.0
        %287 = vmatprep.subr.mxu0 0.0
        %288 = vmatpush1.msra.mxu0 0.0
        %289 = vmatprep.mubr.f32.mxu0 0.0
        %290 = vmatmul.mubr.f32.gmra.mrb[0].mxu0 %v223
        %v291 = vpop.f32.mrb[0].mxu0
        %v292 = vadd.f32 %v220, %v291
        %v293 = vpop.f32.mrb[0].mxu0
        %294 = vdwg.mxu0
        %295 = vst.msk [vmem:[%s200] sm:$0xff] %vm202, %v292
        %s296 = sand.u32 %s97, 1
        %s297 = scalar_lea.sflag [#allocation4], %s296
        %s298 = sand.u32 %s97, 1
        %s299 = smul.addr %s298, 8
        %s300 = scalar_lea.vmem [#allocation7], %s299
        // Predicated region
        $region41: #{tpu_custom_call.1} parent=31 // pred_check
          %p301 = pneg %p107
        $region42: #{tpu_custom_call.1} parent=31 // pred_check_branch
          %303 = sbr.rel (%p301) target = $region44
        $region43: #{tpu_custom_call.1} parent=31 // pred_region
          %s305 = ssub.s32 128, 128
          %306 = vsyncadd %s297, %s305
          %s307 = smul.addr %s21, 128
          %s308 = scalar_lea.hbm %s3, %s307
          %s310 = sshll.u32 %s300, 4
          %s311 = int_to_ptr.vmem [resolvable:$true] %s310
          %313 = dma.vmem_to_hbm [thread:$0]  %s311, 128, %s308, %s297
        $region44: #{tpu_custom_call.1} parent=31 // pred_fallthru
          _
      $region32: #{tpu_custom_call.1} parent=5 // pred_fallthru
        _
      %p314 = scmp.le.s32.totalorder 2, %s16
      // Predicated region
      $region45: #{tpu_custom_call.1} parent=5 // pred_check
        %p315 = pneg %p314
      $region46: #{tpu_custom_call.1} parent=5 // pred_check_branch
        %317 = sbr.rel (%p315) target = $region48
      $region47: #{tpu_custom_call.1} parent=5 // pred_region
        %s318 = ssub.s32 %s16, 2
        // Predicated region
        $region49: #{tpu_custom_call.1} parent=47 // pred_check
          %p319 = pneg %p113
        $region50: #{tpu_custom_call.1} parent=47 // pred_check_branch
          %321 = sbr.rel (%p319) target = $region52
        $region51: #{tpu_custom_call.1} parent=47 // pred_region
          %s322 = sand.u32 %s98, 1
          %s323 = scalar_lea.sflag [#allocation4], %s322
          %s324 = sand.u32 %s98, 1
          %s325 = smul.addr %s324, 8
          %s326 = scalar_lea.vmem [#allocation7], %s325
          %327 = dma.done %s323, 128
        $region52: #{tpu_custom_call.1} parent=47 // pred_fallthru
          _
      $region48: #{tpu_custom_call.1} parent=5 // pred_fallthru
        _
    $region6: #{tpu_custom_call.1} parent=1 // loop_footer
      %s20 = sadd.s32 1, %s16
    $region7: #{tpu_custom_call.1} parent=1 // loop_footer_branch
      %15 = sbr.rel target = $region3
    $region8: #{tpu_custom_call.1} parent=1 // loop_exit
      _
    %328 = vsyncpa [#allocation3], 1
    %s329 = scalar_lea.sflag [#allocation3], 1
    %330 = vsyncpa %s329, 1
    %331 = vsyncpa [#allocation6], 1
    %332 = vsyncpa [#allocation4], 1
    %s333 = scalar_lea.sflag [#allocation4], 1
    %334 = vsyncpa %s333, 1

</llo_original>
